<compile_context>
chip_gen: v7x
topology: tpu7x:2x2x1
jax: 0.10.0
libtpu: 0.0.40
codegen_flags: <defaults>
</compile_context>

<pallas_src>
import jax
import jax.numpy as jnp
from jax.experimental import pallas as pl
from jax.experimental.pallas import tpu as pltpu

INPUT_DIM = 12
HIDDEN_DIMS = (128, 128, 64)
OUTPUT_DIM = 2
LN_EPS = 1e-5
DEFAULT_TILE_B = 1024  # multiple of 8; amortizes per-grid-step overhead


def _round_up(x, m):
    return ((x + m - 1) // m) * m


def _cdiv(a, b):
    return -(-a // b)


def _ln_relu(h, gamma, beta):
    """Single-pass LayerNorm over the last axis fused with ReLU (all f32).

    Row sums go through the MXU (dot with a ones column) so the elementwise
    VALU/XLU path does not carry the cross-lane reductions.
    """
    d = h.shape[-1]
    inv_n = 1.0 / float(d)
    ones = jnp.ones((d, 1), jnp.float32)
    s1 = jnp.dot(h, ones, preferred_element_type=jnp.float32)
    s2 = jnp.dot(h * h, ones, preferred_element_type=jnp.float32)
    mu = s1 * inv_n
    var = s2 * inv_n - mu * mu
    rstd = jax.lax.rsqrt(var + LN_EPS)
    return jnp.maximum((h - mu) * rstd * gamma + beta, 0.0)


def _linear(h, w_ref, b_ref):
    # Cast LHS to the weight dtype (bf16 fast path on v6e/v7x); accumulate f32.
    lhs = h.astype(w_ref.dtype)
    return jnp.dot(lhs, w_ref[...], preferred_element_type=jnp.float32) + b_ref[...]


def actor_kernel(
    x_ref,
    w1_ref, b1_ref, g1_ref, be1_ref,
    w2_ref, b2_ref, g2_ref, be2_ref,
    w3_ref, b3_ref, g3_ref, be3_ref,
    w4_ref, b4_ref,
    out_ref,
):
    x = x_ref[...].astype(jnp.float32)

    h = _ln_relu(_linear(x, w1_ref, b1_ref), g1_ref[...], be1_ref[...])
    h = _ln_relu(_linear(h, w2_ref, b2_ref), g2_ref[...], be2_ref[...])
    h = _ln_relu(_linear(h, w3_ref, b3_ref), g3_ref[...], be3_ref[...])

    logits = _linear(h, w4_ref, b4_ref)            # [tile_b, OUTPUT_DIM]
    out_ref[...] = logits.astype(out_ref.dtype)


def prepare_params(params, use_bf16_matmul=False):
    """One-time parameter preparation (hoisted out of the per-call path).

    Linear weights are stored in [in_dim, out_dim] layout (for x @ W) and
    optionally cast to bf16 for the MXU; biases and LayerNorm gamma/beta are
    kept in f32 and reshaped to (1, dout) lane rows.
    """
    wdt = jnp.bfloat16 if use_bf16_matmul else jnp.float32

    def row(v):
        return jnp.asarray(v, jnp.float32).reshape(1, -1)

    return (
        params["w1"].astype(wdt), row(params["b1"]), row(params["g1"]), row(params["be1"]),
        params["w2"].astype(wdt), row(params["b2"]), row(params["g2"]), row(params["be2"]),
        params["w3"].astype(wdt), row(params["b3"]), row(params["g3"]), row(params["be3"]),
        params["w4"].astype(wdt), row(params["b4"]),
    )


def _choose_tiling(B):
    n_tiles = max(1, _cdiv(B, DEFAULT_TILE_B))
    if B >= 1024:
        n_tiles = max(n_tiles, 2)      # v7x: keep both TensorCores busy
    if n_tiles > 1 and n_tiles % 2 == 1:
        n_tiles += 1                   # even grid step count for the 2-TC split
    tile_b = _round_up(_cdiv(B, n_tiles), 8)   # f32 sublane multiple
    return n_tiles, tile_b


def flappy_bird_actor_forward(x, prepared_params):
    """x: [B, INPUT_DIM] float32.  prepared_params: tuple from prepare_params."""
    B = x.shape[0]
    n_tiles, tile_b = _choose_tiling(B)
    B_pad = n_tiles * tile_b
    if B_pad != B:
        x = jnp.pad(x, ((0, B_pad - B), (0, 0)))

    args = (x,) + tuple(prepared_params)

    # x / out tiles move with the grid; every parameter keeps a constant block
    # index so it stays resident in VMEM across grid steps.
    in_specs = [pl.BlockSpec((tile_b, INPUT_DIM), lambda i: (i, 0))] + [
        pl.BlockSpec(a.shape, lambda i: (0, 0)) for a in prepared_params
    ]
    out_specs = pl.BlockSpec((tile_b, OUTPUT_DIM), lambda i: (i, 0))

    flops = 2 * B_pad * (
        INPUT_DIM * HIDDEN_DIMS[0]
        + HIDDEN_DIMS[0] * HIDDEN_DIMS[1]
        + HIDDEN_DIMS[1] * HIDDEN_DIMS[2]
        + HIDDEN_DIMS[2] * OUTPUT_DIM
        # LN reductions routed through the MXU (two width-1 dots per layer)
        + 2 * (HIDDEN_DIMS[0] + HIDDEN_DIMS[1] + HIDDEN_DIMS[2])
    )
    param_bytes = sum(int(a.size) * a.dtype.itemsize for a in prepared_params)
    bytes_accessed = (int(x.size) * x.dtype.itemsize
                      + B_pad * OUTPUT_DIM * 4
                      + param_bytes)
    cost = pl.CostEstimate(
        flops=flops, transcendentals=3 * B_pad, bytes_accessed=bytes_accessed
    )

    out = pl.pallas_call(
        actor_kernel,
        out_shape=jax.ShapeDtypeStruct((B_pad, OUTPUT_DIM), jnp.float32),
        grid=(n_tiles,),
        in_specs=in_specs,
        out_specs=out_specs,
        compiler_params=pltpu.CompilerParams(
            dimension_semantics=("parallel",),
        ),
        cost_estimate=cost,
    )(*args)
    return out[:B]


def init_params(key):
    """Deterministic synthetic parameters with PyTorch-like semantics.

    Linear weights are kept as [in_dim, out_dim] (already transposed for x @ W).
    LayerNorm gamma/beta are perturbed slightly so the LN path is exercised.
    """
    dims = (INPUT_DIM,) + HIDDEN_DIMS
    params = {}
    keys = jax.random.split(key, 8)
    ki = 0
    for li, (din, dout) in enumerate(zip(dims[:-1], dims[1:]), start=1):
        bound = 1.0 / jnp.sqrt(din)
        params[f"w{li}"] = jax.random.uniform(
            keys[ki], (din, dout), jnp.float32, -bound, bound); ki += 1
        params[f"b{li}"] = jax.random.uniform(
            keys[ki], (dout,), jnp.float32, -bound, bound); ki += 1
        params[f"g{li}"] = (jnp.ones((dout,), jnp.float32)
                            + 0.01 * jnp.arange(dout, dtype=jnp.float32) / dout)
        params[f"be{li}"] = 0.01 * jnp.ones((dout,), jnp.float32)
    din, dout = HIDDEN_DIMS[-1], OUTPUT_DIM
    bound = 1.0 / jnp.sqrt(din)
    params["w4"] = jax.random.uniform(keys[ki], (din, dout), jnp.float32, -bound, bound); ki += 1
    params["b4"] = jax.random.uniform(keys[ki], (dout,), jnp.float32, -bound, bound); ki += 1
    return params


def reference_forward(x, p):
    h = x
    for li in range(1, 4):
        h = h @ p[f"w{li}"] + p[f"b{li}"]
        mu = jnp.mean(h, axis=-1, keepdims=True)
        var = jnp.mean((h - mu) ** 2, axis=-1, keepdims=True)
        h = (h - mu) / jnp.sqrt(var + LN_EPS) * p[f"g{li}"] + p[f"be{li}"]
        h = jnp.maximum(h, 0.0)
    return h @ p["w4"] + p["b4"]


if __name__ == "__main__":
    key = jax.random.PRNGKey(0)
    kx, kp = jax.random.split(key)
    B = 8
    x = jax.random.normal(kx, (B, INPUT_DIM), jnp.float32)
    params = init_params(kp)
    ref = reference_forward(x, params)

    # Strict semantic check: f32 MXU operands.
    prepared_f32 = prepare_params(params, use_bf16_matmul=False)
    logits = jax.block_until_ready(flappy_bird_actor_forward(x, prepared_f32))
    assert logits.shape == (B, OUTPUT_DIM)
    assert jnp.allclose(logits, ref, atol=1e-4, rtol=1e-4), (
        f"f32 mismatch: max abs diff {jnp.max(jnp.abs(logits - ref))}")

    # Fast-path smoke check: bf16 MXU operands (v6e/v7x lever; also valid on v5e).
    prepared_bf16 = prepare_params(params, use_bf16_matmul=True)
    logits_bf16 = jax.block_until_ready(flappy_bird_actor_forward(x, prepared_bf16))
    assert logits_bf16.shape == (B, OUTPUT_DIM)
    assert jnp.allclose(logits_bf16, ref, atol=1e-1, rtol=1e-1), (
        f"bf16 mismatch: max abs diff {jnp.max(jnp.abs(logits_bf16 - ref))}")

    print("KERNEL_OK")
</pallas_src>

<mosaic_0001>
module attributes {stable_mosaic.version = 11 : i64} {
  func.func @actor_kernel(%arg0: i32, %arg1: memref<8x12xf32, #tpu.memory_space<vmem>>, %arg2: memref<12x128xf32, #tpu.memory_space<vmem>>, %arg3: memref<1x128xf32, #tpu.memory_space<vmem>>, %arg4: memref<1x128xf32, #tpu.memory_space<vmem>>, %arg5: memref<1x128xf32, #tpu.memory_space<vmem>>, %arg6: memref<128x128xf32, #tpu.memory_space<vmem>>, %arg7: memref<1x128xf32, #tpu.memory_space<vmem>>, %arg8: memref<1x128xf32, #tpu.memory_space<vmem>>, %arg9: memref<1x128xf32, #tpu.memory_space<vmem>>, %arg10: memref<128x64xf32, #tpu.memory_space<vmem>>, %arg11: memref<1x64xf32, #tpu.memory_space<vmem>>, %arg12: memref<1x64xf32, #tpu.memory_space<vmem>>, %arg13: memref<1x64xf32, #tpu.memory_space<vmem>>, %arg14: memref<64x2xf32, #tpu.memory_space<vmem>>, %arg15: memref<1x2xf32, #tpu.memory_space<vmem>>, %arg16: memref<8x2xf32, #tpu.memory_space<vmem>>) attributes {dimension_semantics = [#tpu.dimension_semantics<parallel>], iteration_bounds = array<i64: 1>, scalar_prefetch = 0 : i64, scratch_operands = 0 : i64, tpu.core_type = #tpu.core_type<tc>, window_params = [{transform_indices = @transform_0, window_bounds = array<i64: 8, 12>}, {pipeline_mode = #tpu.pipeline_mode<synchronous>, transform_indices = @transform_1, window_bounds = array<i64: 12, 128>}, {pipeline_mode = #tpu.pipeline_mode<synchronous>, transform_indices = @transform_2, window_bounds = array<i64: 1, 128>}, {pipeline_mode = #tpu.pipeline_mode<synchronous>, transform_indices = @transform_3, window_bounds = array<i64: 1, 128>}, {pipeline_mode = #tpu.pipeline_mode<synchronous>, transform_indices = @transform_4, window_bounds = array<i64: 1, 128>}, {pipeline_mode = #tpu.pipeline_mode<synchronous>, transform_indices = @transform_5, window_bounds = array<i64: 128, 128>}, {pipeline_mode = #tpu.pipeline_mode<synchronous>, transform_indices = @transform_6, window_bounds = array<i64: 1, 128>}, {pipeline_mode = #tpu.pipeline_mode<synchronous>, transform_indices = @transform_7, window_bounds = array<i64: 1, 128>}, {pipeline_mode = #tpu.pipeline_mode<synchronous>, transform_indices = @transform_8, window_bounds = array<i64: 1, 128>}, {pipeline_mode = #tpu.pipeline_mode<synchronous>, transform_indices = @transform_9, window_bounds = array<i64: 128, 64>}, {pipeline_mode = #tpu.pipeline_mode<synchronous>, transform_indices = @transform_10, window_bounds = array<i64: 1, 64>}, {pipeline_mode = #tpu.pipeline_mode<synchronous>, transform_indices = @transform_11, window_bounds = array<i64: 1, 64>}, {pipeline_mode = #tpu.pipeline_mode<synchronous>, transform_indices = @transform_12, window_bounds = array<i64: 1, 64>}, {pipeline_mode = #tpu.pipeline_mode<synchronous>, transform_indices = @transform_13, window_bounds = array<i64: 64, 2>}, {pipeline_mode = #tpu.pipeline_mode<synchronous>, transform_indices = @transform_14, window_bounds = array<i64: 1, 2>}, {transform_indices = @transform_15, window_bounds = array<i64: 8, 2>}]} {
    %c0 = arith.constant 0 : index
    %c0_0 = arith.constant 0 : index
    %0 = vector.load %arg1[%c0, %c0_0] : memref<8x12xf32, #tpu.memory_space<vmem>>, vector<8x12xf32>
    %c0_1 = arith.constant 0 : index
    %c0_2 = arith.constant 0 : index
    %1 = vector.load %arg2[%c0_1, %c0_2] : memref<12x128xf32, #tpu.memory_space<vmem>>, vector<12x128xf32>
    %cst = arith.constant dense<0.000000e+00> : vector<8x128xf32>
    %2 = tpu.matmul %0, %1, %cst {dimension_numbers = #tpu.dot_dimension_numbers<[1], [0], [0], [1], [0, 0, 1, 1], [], []>} : vector<8x12xf32>, vector<12x128xf32>, vector<8x128xf32> -> vector<8x128xf32>
    %c0_3 = arith.constant 0 : index
    %c0_4 = arith.constant 0 : index
    %3 = vector.load %arg3[%c0_3, %c0_4] : memref<1x128xf32, #tpu.memory_space<vmem>>, vector<1x128xf32>
    %4 = vector.broadcast %3 : vector<1x128xf32> to vector<8x128xf32>
    %5 = arith.addf %2, %4 : vector<8x128xf32>
    %c0_5 = arith.constant 0 : index
    %c0_6 = arith.constant 0 : index
    %6 = vector.load %arg4[%c0_5, %c0_6] : memref<1x128xf32, #tpu.memory_space<vmem>>, vector<1x128xf32>
    %c0_7 = arith.constant 0 : index
    %c0_8 = arith.constant 0 : index
    %7 = vector.load %arg5[%c0_7, %c0_8] : memref<1x128xf32, #tpu.memory_space<vmem>>, vector<1x128xf32>
    %cst_9 = arith.constant 1.000000e+00 : f32
    %8 = vector.broadcast %cst_9 : f32 to vector<128x1xf32>
    %cst_10 = arith.constant dense<0.000000e+00> : vector<8x1xf32>
    %9 = tpu.matmul %5, %8, %cst_10 {dimension_numbers = #tpu.dot_dimension_numbers<[1], [0], [0], [1], [0, 0, 1, 1], [], []>} : vector<8x128xf32>, vector<128x1xf32>, vector<8x1xf32> -> vector<8x1xf32>
    %10 = arith.mulf %5, %5 : vector<8x128xf32>
    %cst_11 = arith.constant dense<0.000000e+00> : vector<8x1xf32>
    %11 = tpu.matmul %10, %8, %cst_11 {dimension_numbers = #tpu.dot_dimension_numbers<[1], [0], [0], [1], [0, 0, 1, 1], [], []>} : vector<8x128xf32>, vector<128x1xf32>, vector<8x1xf32> -> vector<8x1xf32>
    %cst_12 = arith.constant 7.812500e-03 : f32
    %12 = vector.broadcast %cst_12 : f32 to vector<8x1xf32>
    %13 = arith.mulf %9, %12 : vector<8x1xf32>
    %cst_13 = arith.constant 7.812500e-03 : f32
    %14 = vector.broadcast %cst_13 : f32 to vector<8x1xf32>
    %15 = arith.mulf %11, %14 : vector<8x1xf32>
    %16 = arith.mulf %13, %13 : vector<8x1xf32>
    %17 = arith.subf %15, %16 : vector<8x1xf32>
    %cst_14 = arith.constant 9.99999974E-6 : f32
    %18 = vector.broadcast %cst_14 : f32 to vector<8x1xf32>
    %19 = arith.addf %17, %18 : vector<8x1xf32>
    %20 = math.rsqrt %19 : vector<8x1xf32>
    %21 = vector.broadcast %13 : vector<8x1xf32> to vector<8x128xf32>
    %22 = arith.subf %5, %21 : vector<8x128xf32>
    %23 = vector.broadcast %20 : vector<8x1xf32> to vector<8x128xf32>
    %24 = arith.mulf %22, %23 : vector<8x128xf32>
    %25 = vector.broadcast %6 : vector<1x128xf32> to vector<8x128xf32>
    %26 = arith.mulf %24, %25 : vector<8x128xf32>
    %27 = vector.broadcast %7 : vector<1x128xf32> to vector<8x128xf32>
    %28 = arith.addf %26, %27 : vector<8x128xf32>
    %cst_15 = arith.constant 0.000000e+00 : f32
    %29 = vector.broadcast %cst_15 : f32 to vector<8x128xf32>
    %30 = arith.maximumf %28, %29 : vector<8x128xf32>
    %c0_16 = arith.constant 0 : index
    %c0_17 = arith.constant 0 : index
    %31 = vector.load %arg6[%c0_16, %c0_17] : memref<128x128xf32, #tpu.memory_space<vmem>>, vector<128x128xf32>
    %cst_18 = arith.constant dense<0.000000e+00> : vector<8x128xf32>
    %32 = tpu.matmul %30, %31, %cst_18 {dimension_numbers = #tpu.dot_dimension_numbers<[1], [0], [0], [1], [0, 0, 1, 1], [], []>} : vector<8x128xf32>, vector<128x128xf32>, vector<8x128xf32> -> vector<8x128xf32>
    %c0_19 = arith.constant 0 : index
    %c0_20 = arith.constant 0 : index
    %33 = vector.load %arg7[%c0_19, %c0_20] : memref<1x128xf32, #tpu.memory_space<vmem>>, vector<1x128xf32>
    %34 = vector.broadcast %33 : vector<1x128xf32> to vector<8x128xf32>
    %35 = arith.addf %32, %34 : vector<8x128xf32>
    %c0_21 = arith.constant 0 : index
    %c0_22 = arith.constant 0 : index
    %36 = vector.load %arg8[%c0_21, %c0_22] : memref<1x128xf32, #tpu.memory_space<vmem>>, vector<1x128xf32>
    %c0_23 = arith.constant 0 : index
    %c0_24 = arith.constant 0 : index
    %37 = vector.load %arg9[%c0_23, %c0_24] : memref<1x128xf32, #tpu.memory_space<vmem>>, vector<1x128xf32>
    %cst_25 = arith.constant 1.000000e+00 : f32
    %38 = vector.broadcast %cst_25 : f32 to vector<128x1xf32>
    %cst_26 = arith.constant dense<0.000000e+00> : vector<8x1xf32>
    %39 = tpu.matmul %35, %38, %cst_26 {dimension_numbers = #tpu.dot_dimension_numbers<[1], [0], [0], [1], [0, 0, 1, 1], [], []>} : vector<8x128xf32>, vector<128x1xf32>, vector<8x1xf32> -> vector<8x1xf32>
    %40 = arith.mulf %35, %35 : vector<8x128xf32>
    %cst_27 = arith.constant dense<0.000000e+00> : vector<8x1xf32>
    %41 = tpu.matmul %40, %38, %cst_27 {dimension_numbers = #tpu.dot_dimension_numbers<[1], [0], [0], [1], [0, 0, 1, 1], [], []>} : vector<8x128xf32>, vector<128x1xf32>, vector<8x1xf32> -> vector<8x1xf32>
    %cst_28 = arith.constant 7.812500e-03 : f32
    %42 = vector.broadcast %cst_28 : f32 to vector<8x1xf32>
    %43 = arith.mulf %39, %42 : vector<8x1xf32>
    %cst_29 = arith.constant 7.812500e-03 : f32
    %44 = vector.broadcast %cst_29 : f32 to vector<8x1xf32>
    %45 = arith.mulf %41, %44 : vector<8x1xf32>
    %46 = arith.mulf %43, %43 : vector<8x1xf32>
    %47 = arith.subf %45, %46 : vector<8x1xf32>
    %cst_30 = arith.constant 9.99999974E-6 : f32
    %48 = vector.broadcast %cst_30 : f32 to vector<8x1xf32>
    %49 = arith.addf %47, %48 : vector<8x1xf32>
    %50 = math.rsqrt %49 : vector<8x1xf32>
    %51 = vector.broadcast %43 : vector<8x1xf32> to vector<8x128xf32>
    %52 = arith.subf %35, %51 : vector<8x128xf32>
    %53 = vector.broadcast %50 : vector<8x1xf32> to vector<8x128xf32>
    %54 = arith.mulf %52, %53 : vector<8x128xf32>
    %55 = vector.broadcast %36 : vector<1x128xf32> to vector<8x128xf32>
    %56 = arith.mulf %54, %55 : vector<8x128xf32>
    %57 = vector.broadcast %37 : vector<1x128xf32> to vector<8x128xf32>
    %58 = arith.addf %56, %57 : vector<8x128xf32>
    %cst_31 = arith.constant 0.000000e+00 : f32
    %59 = vector.broadcast %cst_31 : f32 to vector<8x128xf32>
    %60 = arith.maximumf %58, %59 : vector<8x128xf32>
    %c0_32 = arith.constant 0 : index
    %c0_33 = arith.constant 0 : index
    %61 = vector.load %arg10[%c0_32, %c0_33] : memref<128x64xf32, #tpu.memory_space<vmem>>, vector<128x64xf32>
    %cst_34 = arith.constant dense<0.000000e+00> : vector<8x64xf32>
    %62 = tpu.matmul %60, %61, %cst_34 {dimension_numbers = #tpu.dot_dimension_numbers<[1], [0], [0], [1], [0, 0, 1, 1], [], []>} : vector<8x128xf32>, vector<128x64xf32>, vector<8x64xf32> -> vector<8x64xf32>
    %c0_35 = arith.constant 0 : index
    %c0_36 = arith.constant 0 : index
    %63 = vector.load %arg11[%c0_35, %c0_36] : memref<1x64xf32, #tpu.memory_space<vmem>>, vector<1x64xf32>
    %64 = vector.broadcast %63 : vector<1x64xf32> to vector<8x64xf32>
    %65 = arith.addf %62, %64 : vector<8x64xf32>
    %c0_37 = arith.constant 0 : index
    %c0_38 = arith.constant 0 : index
    %66 = vector.load %arg12[%c0_37, %c0_38] : memref<1x64xf32, #tpu.memory_space<vmem>>, vector<1x64xf32>
    %c0_39 = arith.constant 0 : index
    %c0_40 = arith.constant 0 : index
    %67 = vector.load %arg13[%c0_39, %c0_40] : memref<1x64xf32, #tpu.memory_space<vmem>>, vector<1x64xf32>
    %cst_41 = arith.constant 1.000000e+00 : f32
    %68 = vector.broadcast %cst_41 : f32 to vector<64x1xf32>
    %cst_42 = arith.constant dense<0.000000e+00> : vector<8x1xf32>
    %69 = tpu.matmul %65, %68, %cst_42 {dimension_numbers = #tpu.dot_dimension_numbers<[1], [0], [0], [1], [0, 0, 1, 1], [], []>} : vector<8x64xf32>, vector<64x1xf32>, vector<8x1xf32> -> vector<8x1xf32>
    %70 = arith.mulf %65, %65 : vector<8x64xf32>
    %cst_43 = arith.constant dense<0.000000e+00> : vector<8x1xf32>
    %71 = tpu.matmul %70, %68, %cst_43 {dimension_numbers = #tpu.dot_dimension_numbers<[1], [0], [0], [1], [0, 0, 1, 1], [], []>} : vector<8x64xf32>, vector<64x1xf32>, vector<8x1xf32> -> vector<8x1xf32>
    %cst_44 = arith.constant 1.562500e-02 : f32
    %72 = vector.broadcast %cst_44 : f32 to vector<8x1xf32>
    %73 = arith.mulf %69, %72 : vector<8x1xf32>
    %cst_45 = arith.constant 1.562500e-02 : f32
    %74 = vector.broadcast %cst_45 : f32 to vector<8x1xf32>
    %75 = arith.mulf %71, %74 : vector<8x1xf32>
    %76 = arith.mulf %73, %73 : vector<8x1xf32>
    %77 = arith.subf %75, %76 : vector<8x1xf32>
    %cst_46 = arith.constant 9.99999974E-6 : f32
    %78 = vector.broadcast %cst_46 : f32 to vector<8x1xf32>
    %79 = arith.addf %77, %78 : vector<8x1xf32>
    %80 = math.rsqrt %79 : vector<8x1xf32>
    %81 = vector.broadcast %73 : vector<8x1xf32> to vector<8x64xf32>
    %82 = arith.subf %65, %81 : vector<8x64xf32>
    %83 = vector.broadcast %80 : vector<8x1xf32> to vector<8x64xf32>
    %84 = arith.mulf %82, %83 : vector<8x64xf32>
    %85 = vector.broadcast %66 : vector<1x64xf32> to vector<8x64xf32>
    %86 = arith.mulf %84, %85 : vector<8x64xf32>
    %87 = vector.broadcast %67 : vector<1x64xf32> to vector<8x64xf32>
    %88 = arith.addf %86, %87 : vector<8x64xf32>
    %cst_47 = arith.constant 0.000000e+00 : f32
    %89 = vector.broadcast %cst_47 : f32 to vector<8x64xf32>
    %90 = arith.maximumf %88, %89 : vector<8x64xf32>
    %c0_48 = arith.constant 0 : index
    %c0_49 = arith.constant 0 : index
    %91 = vector.load %arg14[%c0_48, %c0_49] : memref<64x2xf32, #tpu.memory_space<vmem>>, vector<64x2xf32>
    %cst_50 = arith.constant dense<0.000000e+00> : vector<8x2xf32>
    %92 = tpu.matmul %90, %91, %cst_50 {dimension_numbers = #tpu.dot_dimension_numbers<[1], [0], [0], [1], [0, 0, 1, 1], [], []>} : vector<8x64xf32>, vector<64x2xf32>, vector<8x2xf32> -> vector<8x2xf32>
    %c0_51 = arith.constant 0 : index
    %c0_52 = arith.constant 0 : index
    %93 = vector.load %arg15[%c0_51, %c0_52] : memref<1x2xf32, #tpu.memory_space<vmem>>, vector<1x2xf32>
    %94 = vector.broadcast %93 : vector<1x2xf32> to vector<8x2xf32>
    %95 = arith.addf %92, %94 : vector<8x2xf32>
    %c0_53 = arith.constant 0 : index
    %c0_54 = arith.constant 0 : index
    %96 = vector.load %arg16[%c0_53, %c0_54] : memref<8x2xf32, #tpu.memory_space<vmem>>, vector<8x2xf32>
    tpu.vector_store %arg16[%c0_53, %c0_54], %95 {strides = array<i32>} : memref<8x2xf32, #tpu.memory_space<vmem>>, vector<8x2xf32>,
    return
  }
  func.func @transform_0(%arg0: i32) -> (i32, i32) {
    %c0_i32 = arith.constant 0 : i32
    %c0_i32_0 = arith.constant 0 : i32
    return %arg0, %c0_i32 : i32, i32
  }
  func.func @transform_1(%arg0: i32) -> (i32, i32) {
    %c0_i32 = arith.constant 0 : i32
    %c0_i32_0 = arith.constant 0 : i32
    %c0_i32_1 = arith.constant 0 : i32
    return %c0_i32, %c0_i32_0 : i32, i32
  }
  func.func @transform_2(%arg0: i32) -> (i32, i32) {
    %c0_i32 = arith.constant 0 : i32
    %c0_i32_0 = arith.constant 0 : i32
    %c0_i32_1 = arith.constant 0 : i32
    return %c0_i32, %c0_i32_0 : i32, i32
  }
  func.func @transform_3(%arg0: i32) -> (i32, i32) {
    %c0_i32 = arith.constant 0 : i32
    %c0_i32_0 = arith.constant 0 : i32
    %c0_i32_1 = arith.constant 0 : i32
    return %c0_i32, %c0_i32_0 : i32, i32
  }
  func.func @transform_4(%arg0: i32) -> (i32, i32) {
    %c0_i32 = arith.constant 0 : i32
    %c0_i32_0 = arith.constant 0 : i32
    %c0_i32_1 = arith.constant 0 : i32
    return %c0_i32, %c0_i32_0 : i32, i32
  }
  func.func @transform_5(%arg0: i32) -> (i32, i32) {
    %c0_i32 = arith.constant 0 : i32
    %c0_i32_0 = arith.constant 0 : i32
    %c0_i32_1 = arith.constant 0 : i32
    return %c0_i32, %c0_i32_0 : i32, i32
  }
  func.func @transform_6(%arg0: i32) -> (i32, i32) {
    %c0_i32 = arith.constant 0 : i32
    %c0_i32_0 = arith.constant 0 : i32
    %c0_i32_1 = arith.constant 0 : i32
    return %c0_i32, %c0_i32_0 : i32, i32
  }
  func.func @transform_7(%arg0: i32) -> (i32, i32) {
    %c0_i32 = arith.constant 0 : i32
    %c0_i32_0 = arith.constant 0 : i32
    %c0_i32_1 = arith.constant 0 : i32
    return %c0_i32, %c0_i32_0 : i32, i32
  }
  func.func @transform_8(%arg0: i32) -> (i32, i32) {
    %c0_i32 = arith.constant 0 : i32
    %c0_i32_0 = arith.constant 0 : i32
    %c0_i32_1 = arith.constant 0 : i32
    return %c0_i32, %c0_i32_0 : i32, i32
  }
  func.func @transform_9(%arg0: i32) -> (i32, i32) {
    %c0_i32 = arith.constant 0 : i32
    %c0_i32_0 = arith.constant 0 : i32
    %c0_i32_1 = arith.constant 0 : i32
    return %c0_i32, %c0_i32_0 : i32, i32
  }
  func.func @transform_10(%arg0: i32) -> (i32, i32) {
    %c0_i32 = arith.constant 0 : i32
    %c0_i32_0 = arith.constant 0 : i32
    %c0_i32_1 = arith.constant 0 : i32
    return %c0_i32, %c0_i32_0 : i32, i32
  }
  func.func @transform_11(%arg0: i32) -> (i32, i32) {
    %c0_i32 = arith.constant 0 : i32
    %c0_i32_0 = arith.constant 0 : i32
    %c0_i32_1 = arith.constant 0 : i32
    return %c0_i32, %c0_i32_0 : i32, i32
  }
  func.func @transform_12(%arg0: i32) -> (i32, i32) {
    %c0_i32 = arith.constant 0 : i32
    %c0_i32_0 = arith.constant 0 : i32
    %c0_i32_1 = arith.constant 0 : i32
    return %c0_i32, %c0_i32_0 : i32, i32
  }
  func.func @transform_13(%arg0: i32) -> (i32, i32) {
    %c0_i32 = arith.constant 0 : i32
    %c0_i32_0 = arith.constant 0 : i32
    %c0_i32_1 = arith.constant 0 : i32
    return %c0_i32, %c0_i32_0 : i32, i32
  }
  func.func @transform_14(%arg0: i32) -> (i32, i32) {
    %c0_i32 = arith.constant 0 : i32
    %c0_i32_0 = arith.constant 0 : i32
    %c0_i32_1 = arith.constant 0 : i32
    return %c0_i32, %c0_i32_0 : i32, i32
  }
  func.func @transform_15(%arg0: i32) -> (i32, i32) {
    %c0_i32 = arith.constant 0 : i32
    %c0_i32_0 = arith.constant 0 : i32
    return %arg0, %c0_i32 : i32, i32
  }
}

</mosaic_0001>

<llo_original>
// kernel: tpu_custom_call.1
$region0: #{tpu_custom_call.1}
  #allocation0 [shape = 'u32[]', space=smem, size = 0x4, offset = 0x4, fixed_abs, tag = 'smem constant byte address 0x4 - core index']
  #allocation1 [shape = 'u32[144,128]{1,0:T(1,128)}', space=vmem, size = 0x12000, scoped, tag = 'internal scratch']
  %s0 = inlined_call_operand.vmem [shape: f32[8,12], index: 0, kind: input, shape index: {}]
  %s1 = inlined_call_operand.vmem [shape: f32[12,128], index: 1, kind: input, shape index: {}]
  %s2 = inlined_call_operand.vmem [shape: f32[1,128], index: 2, kind: input, shape index: {}]
  %s3 = inlined_call_operand.vmem [shape: f32[1,128], index: 3, kind: input, shape index: {}]
  %s4 = inlined_call_operand.vmem [shape: f32[1,128], index: 4, kind: input, shape index: {}]
  %s5 = inlined_call_operand.vmem [shape: f32[128,128], index: 5, kind: input, shape index: {}]
  %s6 = inlined_call_operand.vmem [shape: f32[1,128], index: 6, kind: input, shape index: {}]
  %s7 = inlined_call_operand.vmem [shape: f32[1,128], index: 7, kind: input, shape index: {}]
  %s8 = inlined_call_operand.vmem [shape: f32[1,128], index: 8, kind: input, shape index: {}]
  %s9 = inlined_call_operand.vmem [shape: f32[128,64], index: 9, kind: input, shape index: {}]
  %s10 = inlined_call_operand.vmem [shape: f32[1,64], index: 10, kind: input, shape index: {}]
  %s11 = inlined_call_operand.vmem [shape: f32[1,64], index: 11, kind: input, shape index: {}]
  %s12 = inlined_call_operand.vmem [shape: f32[1,64], index: 12, kind: input, shape index: {}]
  %s13 = inlined_call_operand.vmem [shape: f32[64,2], index: 13, kind: input, shape index: {}]
  %s14 = inlined_call_operand.vmem [shape: f32[1,2], index: 14, kind: input, shape index: {}]
  %s15 = inlined_call_operand.vmem [shape: f32[8,2], index: 15, kind: output, shape index: {}]
  %s16 = sld [smem:[#allocation0]]
  $region70: #{tpu_custom_call.1} parent=0
    _
  %s18 = ssub.s32 1, %s16
  %s19 = scalar_select 0, %s18, %s16
  // Predicated region
  $region2: #{tpu_custom_call.1} parent=0 // pred_check
    _
  $region3: #{tpu_custom_call.1} parent=0 // pred_check_branch
    %21 = sbr.rel (0) target = $region5
  $region4: #{tpu_custom_call.1} parent=0 // pred_region
    _
  $region5: #{tpu_custom_call.1} parent=0 // pred_fallthru
    _
  // Predicated region
  $region6: #{tpu_custom_call.1} parent=0 // pred_check
    _
  $region7: #{tpu_custom_call.1} parent=0 // pred_check_branch
    %23 = sbr.rel (0) target = $region9
  $region8: #{tpu_custom_call.1} parent=0 // pred_region
    _
  $region9: #{tpu_custom_call.1} parent=0 // pred_fallthru
    _
  // Predicated region
  $region10: #{tpu_custom_call.1} parent=0 // pred_check
    _
  $region11: #{tpu_custom_call.1} parent=0 // pred_check_branch
    %25 = sbr.rel (0) target = $region13
  $region12: #{tpu_custom_call.1} parent=0 // pred_region
    _
  $region13: #{tpu_custom_call.1} parent=0 // pred_fallthru
    _
  // Predicated region
  $region14: #{tpu_custom_call.1} parent=0 // pred_check
    _
  $region15: #{tpu_custom_call.1} parent=0 // pred_check_branch
    %27 = sbr.rel (0) target = $region17
  $region16: #{tpu_custom_call.1} parent=0 // pred_region
    _
  $region17: #{tpu_custom_call.1} parent=0 // pred_fallthru
    _
  // Predicated region
  $region18: #{tpu_custom_call.1} parent=0 // pred_check
    _
  $region19: #{tpu_custom_call.1} parent=0 // pred_check_branch
    %29 = sbr.rel (0) target = $region21
  $region20: #{tpu_custom_call.1} parent=0 // pred_region
    _
  $region21: #{tpu_custom_call.1} parent=0 // pred_fallthru
    _
  // Predicated region
  $region22: #{tpu_custom_call.1} parent=0 // pred_check
    _
  $region23: #{tpu_custom_call.1} parent=0 // pred_check_branch
    %31 = sbr.rel (0) target = $region25
  $region24: #{tpu_custom_call.1} parent=0 // pred_region
    _
  $region25: #{tpu_custom_call.1} parent=0 // pred_fallthru
    _
  // Predicated region
  $region26: #{tpu_custom_call.1} parent=0 // pred_check
    _
  $region27: #{tpu_custom_call.1} parent=0 // pred_check_branch
    %33 = sbr.rel (0) target = $region29
  $region28: #{tpu_custom_call.1} parent=0 // pred_region
    _
  $region29: #{tpu_custom_call.1} parent=0 // pred_fallthru
    _
  // Predicated region
  $region30: #{tpu_custom_call.1} parent=0 // pred_check
    _
  $region31: #{tpu_custom_call.1} parent=0 // pred_check_branch
    %35 = sbr.rel (0) target = $region33
  $region32: #{tpu_custom_call.1} parent=0 // pred_region
    _
  $region33: #{tpu_custom_call.1} parent=0 // pred_fallthru
    _
  // Predicated region
  $region34: #{tpu_custom_call.1} parent=0 // pred_check
    _
  $region35: #{tpu_custom_call.1} parent=0 // pred_check_branch
    %37 = sbr.rel (0) target = $region37
  $region36: #{tpu_custom_call.1} parent=0 // pred_region
    _
  $region37: #{tpu_custom_call.1} parent=0 // pred_fallthru
    _
  // Predicated region
  $region38: #{tpu_custom_call.1} parent=0 // pred_check
    _
  $region39: #{tpu_custom_call.1} parent=0 // pred_check_branch
    %39 = sbr.rel (0) target = $region41
  $region40: #{tpu_custom_call.1} parent=0 // pred_region
    _
  $region41: #{tpu_custom_call.1} parent=0 // pred_fallthru
    _
  // Predicated region
  $region42: #{tpu_custom_call.1} parent=0 // pred_check
    _
  $region43: #{tpu_custom_call.1} parent=0 // pred_check_branch
    %41 = sbr.rel (0) target = $region45
  $region44: #{tpu_custom_call.1} parent=0 // pred_region
    _
  $region45: #{tpu_custom_call.1} parent=0 // pred_fallthru
    _
  // Predicated region
  $region46: #{tpu_custom_call.1} parent=0 // pred_check
    _
  $region47: #{tpu_custom_call.1} parent=0 // pred_check_branch
    %43 = sbr.rel (0) target = $region49
  $region48: #{tpu_custom_call.1} parent=0 // pred_region
    _
  $region49: #{tpu_custom_call.1} parent=0 // pred_fallthru
    _
  // Predicated region
  $region50: #{tpu_custom_call.1} parent=0 // pred_check
    _
  $region51: #{tpu_custom_call.1} parent=0 // pred_check_branch
    %45 = sbr.rel (0) target = $region53
  $region52: #{tpu_custom_call.1} parent=0 // pred_region
    _
  $region53: #{tpu_custom_call.1} parent=0 // pred_fallthru
    _
  // Predicated region
  $region54: #{tpu_custom_call.1} parent=0 // pred_check
    _
  $region55: #{tpu_custom_call.1} parent=0 // pred_check_branch
    %47 = sbr.rel (0) target = $region57
  $region56: #{tpu_custom_call.1} parent=0 // pred_region
    _
  $region57: #{tpu_custom_call.1} parent=0 // pred_fallthru
    _
  // Predicated region
  $region58: #{tpu_custom_call.1} parent=0 // pred_check
    _
  $region59: #{tpu_custom_call.1} parent=0 // pred_check_branch
    %49 = sbr.rel (0) target = $region61
  $region60: #{tpu_custom_call.1} parent=0 // pred_region
    _
  $region61: #{tpu_custom_call.1} parent=0 // pred_fallthru
    _
  %v50 = vld [vmem:[%s0] sm:$0xff]
  %v51 = vld [vmem:[%s1] sm:$0xff]
  %v52 = vld [vmem:[%s1 + $0x8] sm:$0xf]
  %v53 = vld [vmem:[%s2] sm:$0x1]
  %v55 = vlaneseq
  %v56 = vshrl.u32 %v55, 7
  %v57 = vsub.s32 0, %v56
  %v58 = vrot.slane %v53, %v57
  %vm60 = vcmask 97280
  %v62 = vsel %vm60, %v50, 0
  %vm64 = vcmask 1043456
  %v66 = vsel %vm64, %v52, 0
  %68 = vmatprep.subr.mxu0 0.0
  %69 = vmatpush1.msra.mxu0 %v51
  %70 = vmatprep.subr.mxu0 0.0
  %71 = vmatpush1.msra.mxu0 %v66
  %72 = vmatprep.subr.mxu0 0.0
  %73 = vmatpush1.msra.mxu0 0.0
  %74 = vmatprep.subr.mxu0 0.0
  %75 = vmatpush1.msra.mxu0 0.0
  %76 = vmatprep.subr.mxu0 0.0
  %77 = vmatpush1.msra.mxu0 0.0
  %78 = vmatprep.subr.mxu0 0.0
  %79 = vmatpush1.msra.mxu0 0.0
  %80 = vmatprep.subr.mxu0 0.0
  %81 = vmatpush1.msra.mxu0 0.0
  %82 = vmatprep.subr.mxu0 0.0
  %83 = vmatpush1.msra.mxu0 0.0
  %84 = vmatprep.subr.mxu0 0.0
  %85 = vmatpush1.msra.mxu0 0.0
  %86 = vmatprep.subr.mxu0 0.0
  %87 = vmatpush1.msra.mxu0 0.0
  %88 = vmatprep.subr.mxu0 0.0
  %89 = vmatpush1.msra.mxu0 0.0
  %90 = vmatprep.subr.mxu0 0.0
  %91 = vmatpush1.msra.mxu0 0.0
  %92 = vmatprep.subr.mxu0 0.0
  %93 = vmatpush1.msra.mxu0 0.0
  %94 = vmatprep.subr.mxu0 0.0
  %95 = vmatpush1.msra.mxu0 0.0
  %96 = vmatprep.subr.mxu0 0.0
  %97 = vmatpush1.msra.mxu0 0.0
  %98 = vmatprep.subr.mxu0 0.0
  %99 = vmatpush1.msra.mxu0 0.0
  %100 = vmatprep.subr.mxu0 0.0
  %101 = vmatpush1.msra.mxu0 0.0
  %102 = vmatprep.subr.mxu0 0.0
  %103 = vmatpush1.msra.mxu0 0.0
  %104 = vmatprep.subr.mxu0 0.0
  %105 = vmatpush1.msra.mxu0 0.0
  %106 = vmatprep.subr.mxu0 0.0
  %107 = vmatpush1.msra.mxu0 0.0
  %108 = vmatprep.subr.mxu0 0.0
  %109 = vmatpush1.msra.mxu0 0.0
  %110 = vmatprep.subr.mxu0 0.0
  %111 = vmatpush1.msra.mxu0 0.0
  %112 = vmatprep.subr.mxu0 0.0
  %113 = vmatpush1.msra.mxu0 0.0
  %114 = vmatprep.subr.mxu0 0.0
  %115 = vmatpush1.msra.mxu0 0.0
  %116 = vmatprep.subr.mxu0 0.0
  %117 = vmatpush1.msra.mxu0 0.0
  %118 = vmatprep.subr.mxu0 0.0
  %119 = vmatpush1.msra.mxu0 0.0
  %120 = vmatprep.subr.mxu0 0.0
  %121 = vmatpush1.msra.mxu0 0.0
  %122 = vmatprep.subr.mxu0 0.0
  %123 = vmatpush1.msra.mxu0 0.0
  %124 = vmatprep.subr.mxu0 0.0
  %125 = vmatpush1.msra.mxu0 0.0
  %126 = vmatprep.subr.mxu0 0.0
  %127 = vmatpush1.msra.mxu0 0.0
  %128 = vmatprep.subr.mxu0 0.0
  %129 = vmatpush1.msra.mxu0 0.0
  %130 = vmatprep.subr.mxu0 0.0
  %131 = vmatpush1.msra.mxu0 0.0
  %132 = vmatprep.mubr.f32.mxu0 0.0
  %133 = vmatmul.mubr.f32.gmra.mrb[0].mxu0 %v62
  %v134 = vpop.f32.mrb[0].mxu0
  %v135 = vadd.f32 %v58, %v134
  %v136 = vpop.f32.mrb[0].mxu0
  %137 = vdwg.mxu0
  %v138 = vld [vmem:[%s3] sm:$0x1]
  %v139 = vld [vmem:[%s4] sm:$0x1]
  %140 = vmatprep.subr.mxu0 0.0
  %141 = vmatpush1.msra.mxu0 1.0
  %142 = vmatprep.subr.mxu0 0.0
  %143 = vmatpush1.msra.mxu0 1.0
  %144 = vmatprep.subr.mxu0 0.0
  %145 = vmatpush1.msra.mxu0 1.0
  %146 = vmatprep.subr.mxu0 0.0
  %147 = vmatpush1.msra.mxu0 1.0
  %148 = vmatprep.subr.mxu0 0.0
  %149 = vmatpush1.msra.mxu0 1.0
  %150 = vmatprep.subr.mxu0 0.0
  %151 = vmatpush1.msra.mxu0 1.0
  %152 = vmatprep.subr.mxu0 0.0
  %153 = vmatpush1.msra.mxu0 1.0
  %154 = vmatprep.subr.mxu0 0.0
  %155 = vmatpush1.msra.mxu0 1.0
  %156 = vmatprep.subr.mxu0 0.0
  %157 = vmatpush1.msra.mxu0 1.0
  %158 = vmatprep.subr.mxu0 0.0
  %159 = vmatpush1.msra.mxu0 1.0
  %160 = vmatprep.subr.mxu0 0.0
  %161 = vmatpush1.msra.mxu0 1.0
  %162 = vmatprep.subr.mxu0 0.0
  %163 = vmatpush1.msra.mxu0 1.0
  %164 = vmatprep.subr.mxu0 0.0
  %165 = vmatpush1.msra.mxu0 1.0
  %166 = vmatprep.subr.mxu0 0.0
  %167 = vmatpush1.msra.mxu0 1.0
  %168 = vmatprep.subr.mxu0 0.0
  %169 = vmatpush1.msra.mxu0 1.0
  %170 = vmatprep.subr.mxu0 0.0
  %171 = vmatpush1.msra.mxu0 1.0
  %172 = vmatprep.subr.mxu0 0.0
  %173 = vmatpush1.msra.mxu0 0.0
  %174 = vmatprep.subr.mxu0 0.0
  %175 = vmatpush1.msra.mxu0 0.0
  %176 = vmatprep.subr.mxu0 0.0
  %177 = vmatpush1.msra.mxu0 0.0
  %178 = vmatprep.subr.mxu0 0.0
  %179 = vmatpush1.msra.mxu0 0.0
  %180 = vmatprep.subr.mxu0 0.0
  %181 = vmatpush1.msra.mxu0 0.0
  %182 = vmatprep.subr.mxu0 0.0
  %183 = vmatpush1.msra.mxu0 0.0
  %184 = vmatprep.subr.mxu0 0.0
  %185 = vmatpush1.msra.mxu0 0.0
  %186 = vmatprep.subr.mxu0 0.0
  %187 = vmatpush1.msra.mxu0 0.0
  %188 = vmatprep.subr.mxu0 0.0
  %189 = vmatpush1.msra.mxu0 0.0
  %190 = vmatprep.subr.mxu0 0.0
  %191 = vmatpush1.msra.mxu0 0.0
  %192 = vmatprep.subr.mxu0 0.0
  %193 = vmatpush1.msra.mxu0 0.0
  %194 = vmatprep.subr.mxu0 0.0
  %195 = vmatpush1.msra.mxu0 0.0
  %196 = vmatprep.subr.mxu0 0.0
  %197 = vmatpush1.msra.mxu0 0.0
  %198 = vmatprep.subr.mxu0 0.0
  %199 = vmatpush1.msra.mxu0 0.0
  %200 = vmatprep.subr.mxu0 0.0
  %201 = vmatpush1.msra.mxu0 0.0
  %202 = vmatprep.subr.mxu0 0.0
  %203 = vmatpush1.msra.mxu0 0.0
  %204 = vmatprep.mubr.f32.mxu0 0.0
  %205 = vmatmul.mubr.f32.gmra.mrb[0].mxu0 %v135
  %v206 = vpop.f32.mrb[0].mxu0
  %v207 = vadd.f32 0.0, %v206
  %v208 = vpop.f32.mrb[0].mxu0
  %209 = vdwg.mxu0
  %v210 = vmul.f32 %v135, %v135
  %211 = vmatprep.subr.mxu0 0.0
  %212 = vmatpush1.msra.mxu0 1.0
  %213 = vmatprep.subr.mxu0 0.0
  %214 = vmatpush1.msra.mxu0 1.0
  %215 = vmatprep.subr.mxu0 0.0
  %216 = vmatpush1.msra.mxu0 1.0
  %217 = vmatprep.subr.mxu0 0.0
  %218 = vmatpush1.msra.mxu0 1.0
  %219 = vmatprep.subr.mxu0 0.0
  %220 = vmatpush1.msra.mxu0 1.0
  %221 = vmatprep.subr.mxu0 0.0
  %222 = vmatpush1.msra.mxu0 1.0
  %223 = vmatprep.subr.mxu0 0.0
  %224 = vmatpush1.msra.mxu0 1.0
  %225 = vmatprep.subr.mxu0 0.0
  %226 = vmatpush1.msra.mxu0 1.0
  %227 = vmatprep.subr.mxu0 0.0
  %228 = vmatpush1.msra.mxu0 1.0
  %229 = vmatprep.subr.mxu0 0.0
  %230 = vmatpush1.msra.mxu0 1.0
  %231 = vmatprep.subr.mxu0 0.0
  %232 = vmatpush1.msra.mxu0 1.0
  %233 = vmatprep.subr.mxu0 0.0
  %234 = vmatpush1.msra.mxu0 1.0
  %235 = vmatprep.subr.mxu0 0.0
  %236 = vmatpush1.msra.mxu0 1.0
  %237 = vmatprep.subr.mxu0 0.0
  %238 = vmatpush1.msra.mxu0 1.0
  %239 = vmatprep.subr.mxu0 0.0
  %240 = vmatpush1.msra.mxu0 1.0
  %241 = vmatprep.subr.mxu0 0.0
  %242 = vmatpush1.msra.mxu0 1.0
  %243 = vmatprep.subr.mxu0 0.0
  %244 = vmatpush1.msra.mxu0 0.0
  %245 = vmatprep.subr.mxu0 0.0
  %246 = vmatpush1.msra.mxu0 0.0
  %247 = vmatprep.subr.mxu0 0.0
  %248 = vmatpush1.msra.mxu0 0.0
  %249 = vmatprep.subr.mxu0 0.0
  %250 = vmatpush1.msra.mxu0 0.0
  %251 = vmatprep.subr.mxu0 0.0
  %252 = vmatpush1.msra.mxu0 0.0
  %253 = vmatprep.subr.mxu0 0.0
  %254 = vmatpush1.msra.mxu0 0.0
  %255 = vmatprep.subr.mxu0 0.0
  %256 = vmatpush1.msra.mxu0 0.0
  %257 = vmatprep.subr.mxu0 0.0
  %258 = vmatpush1.msra.mxu0 0.0
  %259 = vmatprep.subr.mxu0 0.0
  %260 = vmatpush1.msra.mxu0 0.0
  %261 = vmatprep.subr.mxu0 0.0
  %262 = vmatpush1.msra.mxu0 0.0
  %263 = vmatprep.subr.mxu0 0.0
  %264 = vmatpush1.msra.mxu0 0.0
  %265 = vmatprep.subr.mxu0 0.0
  %266 = vmatpush1.msra.mxu0 0.0
  %267 = vmatprep.subr.mxu0 0.0
  %268 = vmatpush1.msra.mxu0 0.0
  %269 = vmatprep.subr.mxu0 0.0
  %270 = vmatpush1.msra.mxu0 0.0
  %271 = vmatprep.subr.mxu0 0.0
  %272 = vmatpush1.msra.mxu0 0.0
  %273 = vmatprep.subr.mxu0 0.0
  %274 = vmatpush1.msra.mxu0 0.0
  %275 = vmatprep.mubr.f32.mxu0 0.0
  %276 = vmatmul.mubr.f32.gmra.mrb[0].mxu0 %v210
  %v277 = vpop.f32.mrb[0].mxu0
  %v278 = vadd.f32 0.0, %v277
  %v279 = vpop.f32.mrb[0].mxu0
  %280 = vdwg.mxu0
  %v281 = vmul.f32 %v207, 0.0078125
  %v282 = vmul.f32 %v278, 0.0078125
  %v283 = vmul.f32 %v281, %v281
  %v284 = vsub.f32 %v282, %v283
  %v285 = vadd.f32 %v284, 1e-05
  %v286 = vrsqrt.pop %v285
  %288 = vset.pattern.permute.xlu0 0
  %289 = vperm.xlu0 %288, %v281
  %v290 = vpop.permute.xlu0 %289
  %v292 = vsub.f32 %v135, %v290
  %294 = vset.pattern.permute.xlu0 0
  %295 = vperm.xlu0 %294, %v286
  %v296 = vpop.permute.xlu0 %295
  %v298 = vmul.f32 %v292, %v296
  %v300 = vlaneseq
  %v301 = vshrl.u32 %v300, 7
  %v302 = vsub.s32 0, %v301
  %v303 = vrot.slane %v138, %v302
  %v305 = vmul.f32 %v298, %v303
  %v307 = vlaneseq
  %v308 = vshrl.u32 %v307, 7
  %v309 = vsub.s32 0, %v308
  %v310 = vrot.slane %v139, %v309
  %v312 = vadd.f32 %v305, %v310
  %v313 = vmax.f32 %v312, 0.0
  %v314 = vld [vmem:[%s5] sm:$0xff]
  %v315 = vld [vmem:[%s5 + $0x8] sm:$0xff]
  %v316 = vld [vmem:[%s5 + $0x10] sm:$0xff]
  %v317 = vld [vmem:[%s5 + $0x18] sm:$0xff]
  %v318 = vld [vmem:[%s5 + $0x20] sm:$0xff]
  %v319 = vld [vmem:[%s5 + $0x28] sm:$0xff]
  %v320 = vld [vmem:[%s5 + $0x30] sm:$0xff]
  %v321 = vld [vmem:[%s5 + $0x38] sm:$0xff]
  %v322 = vld [vmem:[%s5 + $0x40] sm:$0xff]
  %v323 = vld [vmem:[%s5 + $0x48] sm:$0xff]
  %v324 = vld [vmem:[%s5 + $0x50] sm:$0xff]
  %v325 = vld [vmem:[%s5 + $0x58] sm:$0xff]
  %v326 = vld [vmem:[%s5 + $0x60] sm:$0xff]
  %v327 = vld [vmem:[%s5 + $0x68] sm:$0xff]
  %v328 = vld [vmem:[%s5 + $0x70] sm:$0xff]
  %v329 = vld [vmem:[%s5 + $0x78] sm:$0xff]
  %v330 = vld [vmem:[%s6] sm:$0x1]
  %v332 = vlaneseq
  %v333 = vshrl.u32 %v332, 7
  %v334 = vsub.s32 0, %v333
  %v335 = vrot.slane %v330, %v334
  %337 = vmatprep.subr.mxu0 0.0
  %338 = vmatpush1.msra.mxu0 %v314
  %339 = vmatprep.subr.mxu0 0.0
  %340 = vmatpush1.msra.mxu0 %v315
  %341 = vmatprep.subr.mxu0 0.0
  %342 = vmatpush1.msra.mxu0 %v316
  %343 = vmatprep.subr.mxu0 0.0
  %344 = vmatpush1.msra.mxu0 %v317
  %345 = vmatprep.subr.mxu0 0.0
  %346 = vmatpush1.msra.mxu0 %v318
  %347 = vmatprep.subr.mxu0 0.0
  %348 = vmatpush1.msra.mxu0 %v319
  %349 = vmatprep.subr.mxu0 0.0
  %350 = vmatpush1.msra.mxu0 %v320
  %351 = vmatprep.subr.mxu0 0.0
  %352 = vmatpush1.msra.mxu0 %v321
  %353 = vmatprep.subr.mxu0 0.0
  %354 = vmatpush1.msra.mxu0 %v322
  %355 = vmatprep.subr.mxu0 0.0
  %356 = vmatpush1.msra.mxu0 %v323
  %357 = vmatprep.subr.mxu0 0.0
  %358 = vmatpush1.msra.mxu0 %v324
  %359 = vmatprep.subr.mxu0 0.0
  %360 = vmatpush1.msra.mxu0 %v325
  %361 = vmatprep.subr.mxu0 0.0
  %362 = vmatpush1.msra.mxu0 %v326
  %363 = vmatprep.subr.mxu0 0.0
  %364 = vmatpush1.msra.mxu0 %v327
  %365 = vmatprep.subr.mxu0 0.0
  %366 = vmatpush1.msra.mxu0 %v328
  %367 = vmatprep.subr.mxu0 0.0
  %368 = vmatpush1.msra.mxu0 %v329
  %369 = vmatprep.subr.mxu0 0.0
  %370 = vmatpush1.msra.mxu0 0.0
  %371 = vmatprep.subr.mxu0 0.0
  %372 = vmatpush1.msra.mxu0 0.0
  %373 = vmatprep.subr.mxu0 0.0
  %374 = vmatpush1.msra.mxu0 0.0
  %375 = vmatprep.subr.mxu0 0.0
  %376 = vmatpush1.msra.mxu0 0.0
  %377 = vmatprep.subr.mxu0 0.0
  %378 = vmatpush1.msra.mxu0 0.0
  %379 = vmatprep.subr.mxu0 0.0
  %380 = vmatpush1.msra.mxu0 0.0
  %381 = vmatprep.subr.mxu0 0.0
  %382 = vmatpush1.msra.mxu0 0.0
  %383 = vmatprep.subr.mxu0 0.0
  %384 = vmatpush1.msra.mxu0 0.0
  %385 = vmatprep.subr.mxu0 0.0
  %386 = vmatpush1.msra.mxu0 0.0
  %387 = vmatprep.subr.mxu0 0.0
  %388 = vmatpush1.msra.mxu0 0.0
  %389 = vmatprep.subr.mxu0 0.0
  %390 = vmatpush1.msra.mxu0 0.0
  %391 = vmatprep.subr.mxu0 0.0
  %392 = vmatpush1.msra.mxu0 0.0
  %393 = vmatprep.subr.mxu0 0.0
  %394 = vmatpush1.msra.mxu0 0.0
  %395 = vmatprep.subr.mxu0 0.0
  %396 = vmatpush1.msra.mxu0 0.0
  %397 = vmatprep.subr.mxu0 0.0
  %398 = vmatpush1.msra.mxu0 0.0
  %399 = vmatprep.subr.mxu0 0.0
  %400 = vmatpush1.msra.mxu0 0.0
  %401 = vmatprep.mubr.f32.mxu0 0.0
  %402 = vmatmul.mubr.f32.gmra.mrb[0].mxu0 %v313
  %v403 = vpop.f32.mrb[0].mxu0
  %v404 = vadd.f32 %v335, %v403
  %v405 = vpop.f32.mrb[0].mxu0
  %406 = vdwg.mxu0
  %v407 = vld [vmem:[%s7] sm:$0x1]
  %v408 = vld [vmem:[%s8] sm:$0x1]
  %409 = vmatprep.subr.mxu0 0.0
  %410 = vmatpush1.msra.mxu0 1.0
  %411 = vmatprep.subr.mxu0 0.0
  %412 = vmatpush1.msra.mxu0 1.0
  %413 = vmatprep.subr.mxu0 0.0
  %414 = vmatpush1.msra.mxu0 1.0
  %415 = vmatprep.subr.mxu0 0.0
  %416 = vmatpush1.msra.mxu0 1.0
  %417 = vmatprep.subr.mxu0 0.0
  %418 = vmatpush1.msra.mxu0 1.0
  %419 = vmatprep.subr.mxu0 0.0
  %420 = vmatpush1.msra.mxu0 1.0
  %421 = vmatprep.subr.mxu0 0.0
  %422 = vmatpush1.msra.mxu0 1.0
  %423 = vmatprep.subr.mxu0 0.0
  %424 = vmatpush1.msra.mxu0 1.0
  %425 = vmatprep.subr.mxu0 0.0
  %426 = vmatpush1.msra.mxu0 1.0
  %427 = vmatprep.subr.mxu0 0.0
  %428 = vmatpush1.msra.mxu0 1.0
  %429 = vmatprep.subr.mxu0 0.0
  %430 = vmatpush1.msra.mxu0 1.0
  %431 = vmatprep.subr.mxu0 0.0
  %432 = vmatpush1.msra.mxu0 1.0
  %433 = vmatprep.subr.mxu0 0.0
  %434 = vmatpush1.msra.mxu0 1.0
  %435 = vmatprep.subr.mxu0 0.0
  %436 = vmatpush1.msra.mxu0 1.0
  %437 = vmatprep.subr.mxu0 0.0
  %438 = vmatpush1.msra.mxu0 1.0
  %439 = vmatprep.subr.mxu0 0.0
  %440 = vmatpush1.msra.mxu0 1.0
  %441 = vmatprep.subr.mxu0 0.0
  %442 = vmatpush1.msra.mxu0 0.0
  %443 = vmatprep.subr.mxu0 0.0
  %444 = vmatpush1.msra.mxu0 0.0
  %445 = vmatprep.subr.mxu0 0.0
  %446 = vmatpush1.msra.mxu0 0.0
  %447 = vmatprep.subr.mxu0 0.0
  %448 = vmatpush1.msra.mxu0 0.0
  %449 = vmatprep.subr.mxu0 0.0
  %450 = vmatpush1.msra.mxu0 0.0
  %451 = vmatprep.subr.mxu0 0.0
  %452 = vmatpush1.msra.mxu0 0.0
  %453 = vmatprep.subr.mxu0 0.0
  %454 = vmatpush1.msra.mxu0 0.0
  %455 = vmatprep.subr.mxu0 0.0
  %456 = vmatpush1.msra.mxu0 0.0
  %457 = vmatprep.subr.mxu0 0.0
  %458 = vmatpush1.msra.mxu0 0.0
  %459 = vmatprep.subr.mxu0 0.0
  %460 = vmatpush1.msra.mxu0 0.0
  %461 = vmatprep.subr.mxu0 0.0
  %462 = vmatpush1.msra.mxu0 0.0
  %463 = vmatprep.subr.mxu0 0.0
  %464 = vmatpush1.msra.mxu0 0.0
  %465 = vmatprep.subr.mxu0 0.0
  %466 = vmatpush1.msra.mxu0 0.0
  %467 = vmatprep.subr.mxu0 0.0
  %468 = vmatpush1.msra.mxu0 0.0
  %469 = vmatprep.subr.mxu0 0.0
  %470 = vmatpush1.msra.mxu0 0.0
  %471 = vmatprep.subr.mxu0 0.0
  %472 = vmatpush1.msra.mxu0 0.0
  %473 = vmatprep.mubr.f32.mxu0 0.0
  %474 = vmatmul.mubr.f32.gmra.mrb[0].mxu0 %v404
  %v475 = vpop.f32.mrb[0].mxu0
  %v476 = vadd.f32 0.0, %v475
  %v477 = vpop.f32.mrb[0].mxu0
  %478 = vdwg.mxu0
  %v479 = vmul.f32 %v404, %v404
  %480 = vmatprep.subr.mxu0 0.0
  %481 = vmatpush1.msra.mxu0 1.0
  %482 = vmatprep.subr.mxu0 0.0
  %483 = vmatpush1.msra.mxu0 1.0
  %484 = vmatprep.subr.mxu0 0.0
  %485 = vmatpush1.msra.mxu0 1.0
  %486 = vmatprep.subr.mxu0 0.0
  %487 = vmatpush1.msra.mxu0 1.0
  %488 = vmatprep.subr.mxu0 0.0
  %489 = vmatpush1.msra.mxu0 1.0
  %490 = vmatprep.subr.mxu0 0.0
  %491 = vmatpush1.msra.mxu0 1.0
  %492 = vmatprep.subr.mxu0 0.0
  %493 = vmatpush1.msra.mxu0 1.0
  %494 = vmatprep.subr.mxu0 0.0
  %495 = vmatpush1.msra.mxu0 1.0
  %496 = vmatprep.subr.mxu0 0.0
  %497 = vmatpush1.msra.mxu0 1.0
  %498 = vmatprep.subr.mxu0 0.0
  %499 = vmatpush1.msra.mxu0 1.0
  %500 = vmatprep.subr.mxu0 0.0
  %501 = vmatpush1.msra.mxu0 1.0
  %502 = vmatprep.subr.mxu0 0.0
  %503 = vmatpush1.msra.mxu0 1.0
  %504 = vmatprep.subr.mxu0 0.0
  %505 = vmatpush1.msra.mxu0 1.0
  %506 = vmatprep.subr.mxu0 0.0
  %507 = vmatpush1.msra.mxu0 1.0
  %508 = vmatprep.subr.mxu0 0.0
  %509 = vmatpush1.msra.mxu0 1.0
  %510 = vmatprep.subr.mxu0 0.0
  %511 = vmatpush1.msra.mxu0 1.0
  %512 = vmatprep.subr.mxu0 0.0
  %513 = vmatpush1.msra.mxu0 0.0
  %514 = vmatprep.subr.mxu0 0.0
  %515 = vmatpush1.msra.mxu0 0.0
  %516 = vmatprep.subr.mxu0 0.0
  %517 = vmatpush1.msra.mxu0 0.0
  %518 = vmatprep.subr.mxu0 0.0
  %519 = vmatpush1.msra.mxu0 0.0
  %520 = vmatprep.subr.mxu0 0.0
  %521 = vmatpush1.msra.mxu0 0.0
  %522 = vmatprep.subr.mxu0 0.0
  %523 = vmatpush1.msra.mxu0 0.0
  %524 = vmatprep.subr.mxu0 0.0
  %525 = vmatpush1.msra.mxu0 0.0
  %526 = vmatprep.subr.mxu0 0.0
  %527 = vmatpush1.msra.mxu0 0.0
  %528 = vmatprep.subr.mxu0 0.0
  %529 = vmatpush1.msra.mxu0 0.0
  %530 = vmatprep.subr.mxu0 0.0
  %531 = vmatpush1.msra.mxu0 0.0
  %532 = vmatprep.subr.mxu0 0.0
  %533 = vmatpush1.msra.mxu0 0.0
  %534 = vmatprep.subr.mxu0 0.0
  %535 = vmatpush1.msra.mxu0 0.0
  %536 = vmatprep.subr.mxu0 0.0
  %537 = vmatpush1.msra.mxu0 0.0
  %538 = vmatprep.subr.mxu0 0.0
  %539 = vmatpush1.msra.mxu0 0.0
  %540 = vmatprep.subr.mxu0 0.0
  %541 = vmatpush1.msra.mxu0 0.0
  %542 = vmatprep.subr.mxu0 0.0
  %543 = vmatpush1.msra.mxu0 0.0
  %544 = vmatprep.mubr.f32.mxu0 0.0
  %545 = vmatmul.mubr.f32.gmra.mrb[0].mxu0 %v479
  %v546 = vpop.f32.mrb[0].mxu0
  %v547 = vadd.f32 0.0, %v546
  %v548 = vpop.f32.mrb[0].mxu0
  %549 = vdwg.mxu0
  %v550 = vmul.f32 %v476, 0.0078125
  %v551 = vmul.f32 %v547, 0.0078125
  %v552 = vmul.f32 %v550, %v550
  %v553 = vsub.f32 %v551, %v552
  %v554 = vadd.f32 %v553, 1e-05
  %v555 = vrsqrt.pop %v554
  %557 = vset.pattern.permute.xlu0 0
  %558 = vperm.xlu0 %557, %v550
  %v559 = vpop.permute.xlu0 %558
  %v561 = vsub.f32 %v404, %v559
  %563 = vset.pattern.permute.xlu0 0
  %564 = vperm.xlu0 %563, %v555
  %v565 = vpop.permute.xlu0 %564
  %v567 = vmul.f32 %v561, %v565
  %v569 = vlaneseq
  %v570 = vshrl.u32 %v569, 7
  %v571 = vsub.s32 0, %v570
  %v572 = vrot.slane %v407, %v571
  %v574 = vmul.f32 %v567, %v572
  %v576 = vlaneseq
  %v577 = vshrl.u32 %v576, 7
  %v578 = vsub.s32 0, %v577
  %v579 = vrot.slane %v408, %v578
  %v581 = vadd.f32 %v574, %v579
  %v582 = vmax.f32 %v581, 0.0
  %v583 = vld [vmem:[%s9] sm:$0xff]
  %v584 = vld [vmem:[%s9 + $0x8] sm:$0xff]
  %v585 = vld [vmem:[%s9 + $0x10] sm:$0xff]
  %v586 = vld [vmem:[%s9 + $0x18] sm:$0xff]
  %v587 = vld [vmem:[%s9 + $0x20] sm:$0xff]
  %v588 = vld [vmem:[%s9 + $0x28] sm:$0xff]
  %v589 = vld [vmem:[%s9 + $0x30] sm:$0xff]
  %v590 = vld [vmem:[%s9 + $0x38] sm:$0xff]
  %v591 = vld [vmem:[%s9 + $0x40] sm:$0xff]
  %v592 = vld [vmem:[%s9 + $0x48] sm:$0xff]
  %v593 = vld [vmem:[%s9 + $0x50] sm:$0xff]
  %v594 = vld [vmem:[%s9 + $0x58] sm:$0xff]
  %v595 = vld [vmem:[%s9 + $0x60] sm:$0xff]
  %v596 = vld [vmem:[%s9 + $0x68] sm:$0xff]
  %v597 = vld [vmem:[%s9 + $0x70] sm:$0xff]
  %v598 = vld [vmem:[%s9 + $0x78] sm:$0xff]
  %v599 = vld [vmem:[%s10] sm:$0x1]
  %v601 = vlaneseq
  %v602 = vshrl.u32 %v601, 7
  %v603 = vsub.s32 0, %v602
  %v604 = vrot.slane %v599, %v603
  %606 = vmatprep.subr.mxu0 0.0
  %607 = vmatpush1.msra.mxu0 %v583
  %608 = vmatprep.subr.mxu0 0.0
  %609 = vmatpush1.msra.mxu0 %v584
  %610 = vmatprep.subr.mxu0 0.0
  %611 = vmatpush1.msra.mxu0 %v585
  %612 = vmatprep.subr.mxu0 0.0
  %613 = vmatpush1.msra.mxu0 %v586
  %614 = vmatprep.subr.mxu0 0.0
  %615 = vmatpush1.msra.mxu0 %v587
  %616 = vmatprep.subr.mxu0 0.0
  %617 = vmatpush1.msra.mxu0 %v588
  %618 = vmatprep.subr.mxu0 0.0
  %619 = vmatpush1.msra.mxu0 %v589
  %620 = vmatprep.subr.mxu0 0.0
  %621 = vmatpush1.msra.mxu0 %v590
  %622 = vmatprep.subr.mxu0 0.0
  %623 = vmatpush1.msra.mxu0 %v591
  %624 = vmatprep.subr.mxu0 0.0
  %625 = vmatpush1.msra.mxu0 %v592
  %626 = vmatprep.subr.mxu0 0.0
  %627 = vmatpush1.msra.mxu0 %v593
  %628 = vmatprep.subr.mxu0 0.0
  %629 = vmatpush1.msra.mxu0 %v594
  %630 = vmatprep.subr.mxu0 0.0
  %631 = vmatpush1.msra.mxu0 %v595
  %632 = vmatprep.subr.mxu0 0.0
  %633 = vmatpush1.msra.mxu0 %v596
  %634 = vmatprep.subr.mxu0 0.0
  %635 = vmatpush1.msra.mxu0 %v597
  %636 = vmatprep.subr.mxu0 0.0
  %637 = vmatpush1.msra.mxu0 %v598
  %638 = vmatprep.subr.mxu0 0.0
  %639 = vmatpush1.msra.mxu0 0.0
  %640 = vmatprep.subr.mxu0 0.0
  %641 = vmatpush1.msra.mxu0 0.0
  %642 = vmatprep.subr.mxu0 0.0
  %643 = vmatpush1.msra.mxu0 0.0
  %644 = vmatprep.subr.mxu0 0.0
  %645 = vmatpush1.msra.mxu0 0.0
  %646 = vmatprep.subr.mxu0 0.0
  %647 = vmatpush1.msra.mxu0 0.0
  %648 = vmatprep.subr.mxu0 0.0
  %649 = vmatpush1.msra.mxu0 0.0
  %650 = vmatprep.subr.mxu0 0.0
  %651 = vmatpush1.msra.mxu0 0.0
  %652 = vmatprep.subr.mxu0 0.0
  %653 = vmatpush1.msra.mxu0 0.0
  %654 = vmatprep.subr.mxu0 0.0
  %655 = vmatpush1.msra.mxu0 0.0
  %656 = vmatprep.subr.mxu0 0.0
  %657 = vmatpush1.msra.mxu0 0.0
  %658 = vmatprep.subr.mxu0 0.0
  %659 = vmatpush1.msra.mxu0 0.0
  %660 = vmatprep.subr.mxu0 0.0
  %661 = vmatpush1.msra.mxu0 0.0
  %662 = vmatprep.subr.mxu0 0.0
  %663 = vmatpush1.msra.mxu0 0.0
  %664 = vmatprep.subr.mxu0 0.0
  %665 = vmatpush1.msra.mxu0 0.0
  %666 = vmatprep.subr.mxu0 0.0
  %667 = vmatpush1.msra.mxu0 0.0
  %668 = vmatprep.subr.mxu0 0.0
  %669 = vmatpush1.msra.mxu0 0.0
  %670 = vmatprep.mubr.f32.mxu0 0.0
  %671 = vmatmul.mubr.f32.gmra.mrb[0].mxu0 %v582
  %v672 = vpop.f32.mrb[0].mxu0
  %v673 = vadd.f32 %v604, %v672
  %v674 = vpop.f32.mrb[0].mxu0
  %675 = vdwg.mxu0
  %v676 = vld [vmem:[%s11] sm:$0x1]
  %v677 = vld [vmem:[%s12] sm:$0x1]
  %vm678 = vcmask 523264
  %v680 = vsel %vm678, %v673, 0
  %682 = vmatprep.subr.mxu0 0.0
  %683 = vmatpush1.msra.mxu0 1.0
  %684 = vmatprep.subr.mxu0 0.0
  %685 = vmatpush1.msra.mxu0 1.0
  %686 = vmatprep.subr.mxu0 0.0
  %687 = vmatpush1.msra.mxu0 1.0
  %688 = vmatprep.subr.mxu0 0.0
  %689 = vmatpush1.msra.mxu0 1.0
  %690 = vmatprep.subr.mxu0 0.0
  %691 = vmatpush1.msra.mxu0 1.0
  %692 = vmatprep.subr.mxu0 0.0
  %693 = vmatpush1.msra.mxu0 1.0
  %694 = vmatprep.subr.mxu0 0.0
  %695 = vmatpush1.msra.mxu0 1.0
  %696 = vmatprep.subr.mxu0 0.0
  %697 = vmatpush1.msra.mxu0 1.0
  %698 = vmatprep.subr.mxu0 0.0
  %699 = vmatpush1.msra.mxu0 0.0
  %700 = vmatprep.subr.mxu0 0.0
  %701 = vmatpush1.msra.mxu0 0.0
  %702 = vmatprep.subr.mxu0 0.0
  %703 = vmatpush1.msra.mxu0 0.0
  %704 = vmatprep.subr.mxu0 0.0
  %705 = vmatpush1.msra.mxu0 0.0
  %706 = vmatprep.subr.mxu0 0.0
  %707 = vmatpush1.msra.mxu0 0.0
  %708 = vmatprep.subr.mxu0 0.0
  %709 = vmatpush1.msra.mxu0 0.0
  %710 = vmatprep.subr.mxu0 0.0
  %711 = vmatpush1.msra.mxu0 0.0
  %712 = vmatprep.subr.mxu0 0.0
  %713 = vmatpush1.msra.mxu0 0.0
  %714 = vmatprep.subr.mxu0 0.0
  %715 = vmatpush1.msra.mxu0 0.0
  %716 = vmatprep.subr.mxu0 0.0
  %717 = vmatpush1.msra.mxu0 0.0
  %718 = vmatprep.subr.mxu0 0.0
  %719 = vmatpush1.msra.mxu0 0.0
  %720 = vmatprep.subr.mxu0 0.0
  %721 = vmatpush1.msra.mxu0 0.0
  %722 = vmatprep.subr.mxu0 0.0
  %723 = vmatpush1.msra.mxu0 0.0
  %724 = vmatprep.subr.mxu0 0.0
  %725 = vmatpush1.msra.mxu0 0.0
  %726 = vmatprep.subr.mxu0 0.0
  %727 = vmatpush1.msra.mxu0 0.0
  %728 = vmatprep.subr.mxu0 0.0
  %729 = vmatpush1.msra.mxu0 0.0
  %730 = vmatprep.subr.mxu0 0.0
  %731 = vmatpush1.msra.mxu0 0.0
  %732 = vmatprep.subr.mxu0 0.0
  %733 = vmatpush1.msra.mxu0 0.0
  %734 = vmatprep.subr.mxu0 0.0
  %735 = vmatpush1.msra.mxu0 0.0
  %736 = vmatprep.subr.mxu0 0.0
  %737 = vmatpush1.msra.mxu0 0.0
  %738 = vmatprep.subr.mxu0 0.0
  %739 = vmatpush1.msra.mxu0 0.0
  %740 = vmatprep.subr.mxu0 0.0
  %741 = vmatpush1.msra.mxu0 0.0
  %742 = vmatprep.subr.mxu0 0.0
  %743 = vmatpush1.msra.mxu0 0.0
  %744 = vmatprep.subr.mxu0 0.0
  %745 = vmatpush1.msra.mxu0 0.0
  %746 = vmatprep.mubr.f32.mxu0 0.0
  %747 = vmatmul.mubr.f32.gmra.mrb[0].mxu0 %v680
  %v748 = vpop.f32.mrb[0].mxu0
  %v749 = vadd.f32 0.0, %v748
  %v750 = vpop.f32.mrb[0].mxu0
  %751 = vdwg.mxu0
  %v752 = vmul.f32 %v673, %v673
  %v754 = vsel %vm678, %v752, 0
  %756 = vmatprep.subr.mxu0 0.0
  %757 = vmatpush1.msra.mxu0 1.0
  %758 = vmatprep.subr.mxu0 0.0
  %759 = vmatpush1.msra.mxu0 1.0
  %760 = vmatprep.subr.mxu0 0.0
  %761 = vmatpush1.msra.mxu0 1.0
  %762 = vmatprep.subr.mxu0 0.0
  %763 = vmatpush1.msra.mxu0 1.0
  %764 = vmatprep.subr.mxu0 0.0
  %765 = vmatpush1.msra.mxu0 1.0
  %766 = vmatprep.subr.mxu0 0.0
  %767 = vmatpush1.msra.mxu0 1.0
  %768 = vmatprep.subr.mxu0 0.0
  %769 = vmatpush1.msra.mxu0 1.0
  %770 = vmatprep.subr.mxu0 0.0
  %771 = vmatpush1.msra.mxu0 1.0
  %772 = vmatprep.subr.mxu0 0.0
  %773 = vmatpush1.msra.mxu0 0.0
  %774 = vmatprep.subr.mxu0 0.0
  %775 = vmatpush1.msra.mxu0 0.0
  %776 = vmatprep.subr.mxu0 0.0
  %777 = vmatpush1.msra.mxu0 0.0
  %778 = vmatprep.subr.mxu0 0.0
  %779 = vmatpush1.msra.mxu0 0.0
  %780 = vmatprep.subr.mxu0 0.0
  %781 = vmatpush1.msra.mxu0 0.0
  %782 = vmatprep.subr.mxu0 0.0
  %783 = vmatpush1.msra.mxu0 0.0
  %784 = vmatprep.subr.mxu0 0.0
  %785 = vmatpush1.msra.mxu0 0.0
  %786 = vmatprep.subr.mxu0 0.0
  %787 = vmatpush1.msra.mxu0 0.0
  %788 = vmatprep.subr.mxu0 0.0
  %789 = vmatpush1.msra.mxu0 0.0
  %790 = vmatprep.subr.mxu0 0.0
  %791 = vmatpush1.msra.mxu0 0.0
  %792 = vmatprep.subr.mxu0 0.0
  %793 = vmatpush1.msra.mxu0 0.0
  %794 = vmatprep.subr.mxu0 0.0
  %795 = vmatpush1.msra.mxu0 0.0
  %796 = vmatprep.subr.mxu0 0.0
  %797 = vmatpush1.msra.mxu0 0.0
  %798 = vmatprep.subr.mxu0 0.0
  %799 = vmatpush1.msra.mxu0 0.0
  %800 = vmatprep.subr.mxu0 0.0
  %801 = vmatpush1.msra.mxu0 0.0
  %802 = vmatprep.subr.mxu0 0.0
  %803 = vmatpush1.msra.mxu0 0.0
  %804 = vmatprep.subr.mxu0 0.0
  %805 = vmatpush1.msra.mxu0 0.0
  %806 = vmatprep.subr.mxu0 0.0
  %807 = vmatpush1.msra.mxu0 0.0
  %808 = vmatprep.subr.mxu0 0.0
  %809 = vmatpush1.msra.mxu0 0.0
  %810 = vmatprep.subr.mxu0 0.0
  %811 = vmatpush1.msra.mxu0 0.0
  %812 = vmatprep.subr.mxu0 0.0
  %813 = vmatpush1.msra.mxu0 0.0
  %814 = vmatprep.subr.mxu0 0.0
  %815 = vmatpush1.msra.mxu0 0.0
  %816 = vmatprep.subr.mxu0 0.0
  %817 = vmatpush1.msra.mxu0 0.0
  %818 = vmatprep.subr.mxu0 0.0
  %819 = vmatpush1.msra.mxu0 0.0
  %820 = vmatprep.mubr.f32.mxu0 0.0
  %821 = vmatmul.mubr.f32.gmra.mrb[0].mxu0 %v754
  %v822 = vpop.f32.mrb[0].mxu0
  %v823 = vadd.f32 0.0, %v822
  %v824 = vpop.f32.mrb[0].mxu0
  %825 = vdwg.mxu0
  %v826 = vmul.f32 %v749, 0.015625
  %v827 = vmul.f32 %v823, 0.015625
  %v828 = vmul.f32 %v826, %v826
  %v829 = vsub.f32 %v827, %v828
  %v830 = vadd.f32 %v829, 1e-05
  %v831 = vrsqrt.pop %v830
  %833 = vset.pattern.permute.xlu0 0
  %834 = vperm.xlu0 %833, %v826
  %v835 = vpop.permute.xlu0 %834
  %v837 = vsub.f32 %v673, %v835
  %839 = vset.pattern.permute.xlu0 0
  %840 = vperm.xlu0 %839, %v831
  %v841 = vpop.permute.xlu0 %840
  %v843 = vmul.f32 %v837, %v841
  %v845 = vlaneseq
  %v846 = vshrl.u32 %v845, 7
  %v847 = vsub.s32 0, %v846
  %v848 = vrot.slane %v676, %v847
  %v850 = vmul.f32 %v843, %v848
  %v852 = vlaneseq
  %v853 = vshrl.u32 %v852, 7
  %v854 = vsub.s32 0, %v853
  %v855 = vrot.slane %v677, %v854
  %v857 = vadd.f32 %v850, %v855
  %v858 = vmax.f32 %v857, 0.0
  %v859 = vld [vmem:[%s13] sm:$0xff]
  %v860 = vld [vmem:[%s13 + $0x8] sm:$0xff]
  %v861 = vld [vmem:[%s13 + $0x10] sm:$0xff]
  %v862 = vld [vmem:[%s13 + $0x18] sm:$0xff]
  %v863 = vld [vmem:[%s13 + $0x20] sm:$0xff]
  %v864 = vld [vmem:[%s13 + $0x28] sm:$0xff]
  %v865 = vld [vmem:[%s13 + $0x30] sm:$0xff]
  %v866 = vld [vmem:[%s13 + $0x38] sm:$0xff]
  %v867 = vld [vmem:[%s14] sm:$0x1]
  %v869 = vlaneseq
  %v870 = vshrl.u32 %v869, 7
  %v871 = vsub.s32 0, %v870
  %v872 = vrot.slane %v867, %v871
  %v875 = vsel %vm678, %v858, 0
  %877 = vmatprep.subr.mxu0 0.0
  %878 = vmatpush1.msra.mxu0 %v859
  %879 = vmatprep.subr.mxu0 0.0
  %880 = vmatpush1.msra.mxu0 %v860
  %881 = vmatprep.subr.mxu0 0.0
  %882 = vmatpush1.msra.mxu0 %v861
  %883 = vmatprep.subr.mxu0 0.0
  %884 = vmatpush1.msra.mxu0 %v862
  %885 = vmatprep.subr.mxu0 0.0
  %886 = vmatpush1.msra.mxu0 %v863
  %887 = vmatprep.subr.mxu0 0.0
  %888 = vmatpush1.msra.mxu0 %v864
  %889 = vmatprep.subr.mxu0 0.0
  %890 = vmatpush1.msra.mxu0 %v865
  %891 = vmatprep.subr.mxu0 0.0
  %892 = vmatpush1.msra.mxu0 %v866
  %893 = vmatprep.subr.mxu0 0.0
  %894 = vmatpush1.msra.mxu0 0.0
  %895 = vmatprep.subr.mxu0 0.0
  %896 = vmatpush1.msra.mxu0 0.0
  %897 = vmatprep.subr.mxu0 0.0
  %898 = vmatpush1.msra.mxu0 0.0
  %899 = vmatprep.subr.mxu0 0.0
  %900 = vmatpush1.msra.mxu0 0.0
  %901 = vmatprep.subr.mxu0 0.0
  %902 = vmatpush1.msra.mxu0 0.0
  %903 = vmatprep.subr.mxu0 0.0
  %904 = vmatpush1.msra.mxu0 0.0
  %905 = vmatprep.subr.mxu0 0.0
  %906 = vmatpush1.msra.mxu0 0.0
  %907 = vmatprep.subr.mxu0 0.0
  %908 = vmatpush1.msra.mxu0 0.0
  %909 = vmatprep.subr.mxu0 0.0
  %910 = vmatpush1.msra.mxu0 0.0
  %911 = vmatprep.subr.mxu0 0.0
  %912 = vmatpush1.msra.mxu0 0.0
  %913 = vmatprep.subr.mxu0 0.0
  %914 = vmatpush1.msra.mxu0 0.0
  %915 = vmatprep.subr.mxu0 0.0
  %916 = vmatpush1.msra.mxu0 0.0
  %917 = vmatprep.subr.mxu0 0.0
  %918 = vmatpush1.msra.mxu0 0.0
  %919 = vmatprep.subr.mxu0 0.0
  %920 = vmatpush1.msra.mxu0 0.0
  %921 = vmatprep.subr.mxu0 0.0
  %922 = vmatpush1.msra.mxu0 0.0
  %923 = vmatprep.subr.mxu0 0.0
  %924 = vmatpush1.msra.mxu0 0.0
  %925 = vmatprep.subr.mxu0 0.0
  %926 = vmatpush1.msra.mxu0 0.0
  %927 = vmatprep.subr.mxu0 0.0
  %928 = vmatpush1.msra.mxu0 0.0
  %929 = vmatprep.subr.mxu0 0.0
  %930 = vmatpush1.msra.mxu0 0.0
  %931 = vmatprep.subr.mxu0 0.0
  %932 = vmatpush1.msra.mxu0 0.0
  %933 = vmatprep.subr.mxu0 0.0
  %934 = vmatpush1.msra.mxu0 0.0
  %935 = vmatprep.subr.mxu0 0.0
  %936 = vmatpush1.msra.mxu0 0.0
  %937 = vmatprep.subr.mxu0 0.0
  %938 = vmatpush1.msra.mxu0 0.0
  %939 = vmatprep.subr.mxu0 0.0
  %940 = vmatpush1.msra.mxu0 0.0
  %941 = vmatprep.mubr.f32.mxu0 0.0
  %942 = vmatmul.mubr.f32.gmra.mrb[0].mxu0 %v875
  %v943 = vpop.f32.mrb[0].mxu0
  %v944 = vadd.f32 %v872, %v943
  %v945 = vpop.f32.mrb[0].mxu0
  %946 = vdwg.mxu0
  %vm947 = vcmask 15360
  %948 = vst.msk [vmem:[%s15] sm:$0xff] %vm947, %v944
  // Predicated region
  $region62: #{tpu_custom_call.1} parent=0 // pred_check
    _
  $region63: #{tpu_custom_call.1} parent=0 // pred_check_branch
    %950 = sbr.rel (0) target = $region65
  $region64: #{tpu_custom_call.1} parent=0 // pred_region
    _
  $region65: #{tpu_custom_call.1} parent=0 // pred_fallthru
    _
  // Predicated region
  $region66: #{tpu_custom_call.1} parent=0 // pred_check
    _
  $region67: #{tpu_custom_call.1} parent=0 // pred_check_branch
    %952 = sbr.rel (0) target = $region69
  $region68: #{tpu_custom_call.1} parent=0 // pred_region
    _
  $region69: #{tpu_custom_call.1} parent=0 // pred_fallthru
    _

</llo_original>
